<compile_context>
chip_gen: v6e
topology: v6e:2x2x1
jax: 0.10.0
libtpu: 0.0.40
codegen_flags: <defaults>
</compile_context>

<pallas_src>
import functools

import jax
import jax.numpy as jnp
from jax.experimental import pallas as pl
from jax.experimental.pallas import tpu as pltpu


def _rup8(n):
    return -(-n // 8) * 8


# ---------------------------------------------------------------------------
# Pallas kernel: the whole 5-layer MLP, fully VMEM-resident per batch block.
# Static row offsets into the packed weight slab are closed over via partial.
# ---------------------------------------------------------------------------
def _qnetwork_kernel(x_ref, w_ref, out_ref, *, SG, H, r_bias, r_w1, r_w2, r_w3):
    f32 = jnp.float32
    H2 = 2 * H

    x = x_ref[...]                               # (Bt, S+G)

    # Single-slab, full-lane-width, sublane-aligned reads (1 HBM->VMEM DMA).
    wenc = w_ref[0:SG, :]                        # (S+G, LN), valid [:, :2H] (block-diag)
    bias = w_ref[r_bias:r_bias + 8, :]           # (8, LN): rows = benc, b1, b2, b3
    w1 = w_ref[r_w1:r_w1 + H2, :]                # (2H, LN), valid [:, :H]
    w2 = w_ref[r_w2:r_w2 + H, :]                 # (H, LN),  valid [:, :H]
    w3 = w_ref[r_w3:r_w3 + H, :]                 # (H, LN),  valid [:, :1]

    benc = bias[0:1, :]
    b1 = bias[1:2, :]
    b2 = bias[2:3, :]
    b3 = bias[3:4, :]

    # Fused encoders: [state | gnn] @ block-diag([Wse, Wge]) -> [se | ge].
    enc = jnp.maximum(jnp.dot(x, wenc, preferred_element_type=f32) + benc, 0.0)
    # fc1 on the concatenation (single dot).
    h1 = jnp.maximum(
        jnp.dot(enc[:, :H2], w1, preferred_element_type=f32) + b1, 0.0)
    # fc2
    h2 = jnp.maximum(
        jnp.dot(h1[:, :H], w2, preferred_element_type=f32) + b2, 0.0)
    # fc3 (no activation); lane-dense output, q in column 0, rest exactly 0.
    q = jnp.dot(h2[:, :H], w3, preferred_element_type=f32) + b3
    out_ref[...] = q.astype(out_ref.dtype)


# ---------------------------------------------------------------------------
# Parameter construction (mirrors nn.init.xavier_uniform_ + bias.fill_(0.01)).
# Weights are created directly in [in, out] layout.
# ---------------------------------------------------------------------------
def xavier_uniform(key, fan_in, fan_out, dtype=jnp.float32):
    bound = (6.0 / (fan_in + fan_out)) ** 0.5
    return jax.random.uniform(key, (fan_in, fan_out), dtype, -bound, bound)


def init_qnetwork_params(key, state_size, gnn_embedding_size, hidden_size):
    ks = jax.random.split(key, 5)
    H = hidden_size
    return {
        "wse": xavier_uniform(ks[0], state_size, H),
        "bse": jnp.full((H,), 0.01, jnp.float32),
        "wge": xavier_uniform(ks[1], gnn_embedding_size, H),
        "bge": jnp.full((H,), 0.01, jnp.float32),
        "w1": xavier_uniform(ks[2], 2 * H, H),
        "b1": jnp.full((H,), 0.01, jnp.float32),
        "w2": xavier_uniform(ks[3], H, H),
        "b2": jnp.full((H,), 0.01, jnp.float32),
        "w3": xavier_uniform(ks[4], H, 1),
        "b3": jnp.full((1,), 0.01, jnp.float32),
    }


# ---------------------------------------------------------------------------
# One-time packing of all parameters into a single (rows, LN) f32 slab.
# Row layout (all block starts 8-aligned):
#   [0 : S+G)            block-diagonal encoder weight  (lanes [0:2H))
#   [r_bias : r_bias+8)  biases: row0=benc, row1=b1, row2=b2, row3=b3
#   [r_w1 : r_w1+2H)     fc1 weight (lanes [0:H))
#   [r_w2 : r_w2+H)      fc2 weight (lanes [0:H))
#   [r_w3 : r_w3+H)      fc3 weight (lane 0)
# ---------------------------------------------------------------------------
def pack_qnetwork_params(params, state_size, gnn_embedding_size, hidden_size):
    S, G, H = state_size, gnn_embedding_size, hidden_size
    SG, H2 = S + G, 2 * H
    LN = 128 * (-(-max(H2, 1) // 128))  # lane width, multiple of 128

    r_bias = _rup8(SG)
    r_w1 = r_bias + 8
    r_w2 = r_w1 + _rup8(H2)
    r_w3 = r_w2 + _rup8(H)
    rows = r_w3 + _rup8(H)

    slab = jnp.zeros((rows, LN), jnp.float32)
    # block-diagonal encoder weight
    slab = slab.at[0:S, 0:H].set(params["wse"])
    slab = slab.at[S:SG, H:H2].set(params["wge"])
    # biases
    slab = slab.at[r_bias, 0:H].set(params["bse"])
    slab = slab.at[r_bias, H:H2].set(params["bge"])
    slab = slab.at[r_bias + 1, 0:H].set(params["b1"])
    slab = slab.at[r_bias + 2, 0:H].set(params["b2"])
    slab = slab.at[r_bias + 3, 0:1].set(params["b3"])
    # fc weights
    slab = slab.at[r_w1:r_w1 + H2, 0:H].set(params["w1"])
    slab = slab.at[r_w2:r_w2 + H, 0:H].set(params["w2"])
    slab = slab.at[r_w3:r_w3 + H, 0:1].set(params["w3"])

    meta = dict(S=S, G=G, H=H, LN=LN, rows=rows,
                r_bias=r_bias, r_w1=r_w1, r_w2=r_w2, r_w3=r_w3)
    return slab, meta


# ---------------------------------------------------------------------------
# Wrapper: 1-D unsqueeze glue, batch tiling / padding, pallas_call.
# ---------------------------------------------------------------------------
def qnetwork_forward(slab, meta, state, gnn_embedding, *, block_b=256):
    if state.ndim == 1:
        state = state[None, :]
    if gnn_embedding.ndim == 1:
        gnn_embedding = gnn_embedding[None, :]

    B = state.shape[0]
    S, G, H = meta["S"], meta["G"], meta["H"]
    SG = S + G
    rows, LN = meta["rows"], meta["LN"]

    x = jnp.concatenate(
        [state.astype(jnp.float32), gnn_embedding.astype(jnp.float32)], axis=1)

    # Batch block: multiple of 8 rows, capped; pad the tail block with zeros.
    Bt = min(_rup8(B), _rup8(block_b))
    nb = -(-B // Bt)
    Bp = nb * Bt
    if Bp != B:
        x = jnp.pad(x, ((0, Bp - B), (0, 0)))

    kernel = functools.partial(
        _qnetwork_kernel, SG=SG, H=H,
        r_bias=meta["r_bias"], r_w1=meta["r_w1"],
        r_w2=meta["r_w2"], r_w3=meta["r_w3"])

    out = pl.pallas_call(
        kernel,
        out_shape=jax.ShapeDtypeStruct((Bp, LN), jnp.float32),
        grid_spec=pltpu.PrefetchScalarGridSpec(
            num_scalar_prefetch=0,
            grid=(nb,),
            in_specs=[
                pl.BlockSpec((Bt, SG), lambda i: (i, 0)),     # activations
                pl.BlockSpec((rows, LN), lambda i: (0, 0)),   # resident weights
            ],
            out_specs=pl.BlockSpec((Bt, LN), lambda i: (i, 0)),
        ),
        compiler_params=pltpu.CompilerParams(
            dimension_semantics=("parallel",)),
    )(x, slab)

    return out[:B, :1]   # restore the (B, 1) contract of the PyTorch module


# Pure-JAX reference for correctness checking.
def qnetwork_ref(params, state, gnn_embedding):
    if state.ndim == 1:
        state = state[None, :]
    if gnn_embedding.ndim == 1:
        gnn_embedding = gnn_embedding[None, :]
    se = jax.nn.relu(state @ params["wse"] + params["bse"])
    ge = jax.nn.relu(gnn_embedding @ params["wge"] + params["bge"])
    comb = jnp.concatenate([se, ge], axis=1)
    h = jax.nn.relu(comb @ params["w1"] + params["b1"])
    h = jax.nn.relu(h @ params["w2"] + params["b2"])
    return h @ params["w3"] + params["b3"]


if __name__ == "__main__":
    STATE_SIZE = 8
    GNN_EMB_SIZE = 16
    HIDDEN_SIZE = 32
    BATCH = 4

    key = jax.random.PRNGKey(0)
    kp, ks, kg = jax.random.split(key, 3)

    params = init_qnetwork_params(kp, STATE_SIZE, GNN_EMB_SIZE, HIDDEN_SIZE)
    # One-time packing (hoisted out of the forward path).
    slab, meta = pack_qnetwork_params(params, STATE_SIZE, GNN_EMB_SIZE, HIDDEN_SIZE)

    state = jax.random.normal(ks, (BATCH, STATE_SIZE), jnp.float32)
    gnn_emb = jax.random.normal(kg, (BATCH, GNN_EMB_SIZE), jnp.float32)

    q = qnetwork_forward(slab, meta, state, gnn_emb)
    q = jax.block_until_ready(q)

    q_ref = qnetwork_ref(params, state, gnn_emb)
    assert q.shape == (BATCH, 1), q.shape
    assert jnp.allclose(q, q_ref, atol=1e-5, rtol=1e-5), (q, q_ref)

    print("KERNEL_OK")
</pallas_src>

<mosaic_0001>
module attributes {stable_mosaic.version = 11 : i64} {
  func.func @_qnetwork_kernel(%arg0: i32, %arg1: memref<8x24xf32, #tpu.memory_space<vmem>>, %arg2: memref<160x128xf32, #tpu.memory_space<vmem>>, %arg3: memref<8x128xf32, #tpu.memory_space<vmem>>) attributes {dimension_semantics = [#tpu.dimension_semantics<parallel>], iteration_bounds = array<i64: 1>, scalar_prefetch = 0 : i64, scratch_operands = 0 : i64, tpu.core_type = #tpu.core_type<tc>, window_params = [{transform_indices = @transform_0, window_bounds = array<i64: 8, 24>}, {pipeline_mode = #tpu.pipeline_mode<synchronous>, transform_indices = @transform_1, window_bounds = array<i64: 160, 128>}, {transform_indices = @transform_2, window_bounds = array<i64: 8, 128>}]} {
    %c0 = arith.constant 0 : index
    %c0_0 = arith.constant 0 : index
    %0 = vector.load %arg1[%c0, %c0_0] : memref<8x24xf32, #tpu.memory_space<vmem>>, vector<8x24xf32>
    %c0_1 = arith.constant 0 : index
    %c0_2 = arith.constant 0 : index
    %1 = vector.load %arg2[%c0_1, %c0_2] : memref<160x128xf32, #tpu.memory_space<vmem>>, vector<24x128xf32>
    %c24 = arith.constant 24 : index
    %c0_3 = arith.constant 0 : index
    %2 = vector.load %arg2[%c24, %c0_3] : memref<160x128xf32, #tpu.memory_space<vmem>>, vector<8x128xf32>
    %c32 = arith.constant 32 : index
    %c0_4 = arith.constant 0 : index
    %3 = vector.load %arg2[%c32, %c0_4] : memref<160x128xf32, #tpu.memory_space<vmem>>, vector<64x128xf32>
    %c96 = arith.constant 96 : index
    %c0_5 = arith.constant 0 : index
    %4 = vector.load %arg2[%c96, %c0_5] : memref<160x128xf32, #tpu.memory_space<vmem>>, vector<32x128xf32>
    %c128 = arith.constant 128 : index
    %c0_6 = arith.constant 0 : index
    %5 = vector.load %arg2[%c128, %c0_6] : memref<160x128xf32, #tpu.memory_space<vmem>>, vector<32x128xf32>
    %6 = vector.extract_strided_slice %2 {offsets = [0, 0], sizes = [1, 128], strides = [1, 1]} : vector<8x128xf32> to vector<1x128xf32>
    %7 = vector.extract_strided_slice %2 {offsets = [1, 0], sizes = [1, 128], strides = [1, 1]} : vector<8x128xf32> to vector<1x128xf32>
    %8 = vector.extract_strided_slice %2 {offsets = [2, 0], sizes = [1, 128], strides = [1, 1]} : vector<8x128xf32> to vector<1x128xf32>
    %9 = vector.extract_strided_slice %2 {offsets = [3, 0], sizes = [1, 128], strides = [1, 1]} : vector<8x128xf32> to vector<1x128xf32>
    %cst = arith.constant dense<0.000000e+00> : vector<8x128xf32>
    %10 = tpu.matmul %0, %1, %cst {dimension_numbers = #tpu.dot_dimension_numbers<[1], [0], [0], [1], [0, 0, 1, 1], [], []>} : vector<8x24xf32>, vector<24x128xf32>, vector<8x128xf32> -> vector<8x128xf32>
    %11 = vector.broadcast %6 : vector<1x128xf32> to vector<8x128xf32>
    %12 = arith.addf %10, %11 : vector<8x128xf32>
    %cst_7 = arith.constant 0.000000e+00 : f32
    %13 = vector.broadcast %cst_7 : f32 to vector<8x128xf32>
    %14 = arith.maximumf %12, %13 : vector<8x128xf32>
    %15 = vector.extract_strided_slice %14 {offsets = [0, 0], sizes = [8, 64], strides = [1, 1]} : vector<8x128xf32> to vector<8x64xf32>
    %cst_8 = arith.constant dense<0.000000e+00> : vector<8x128xf32>
    %16 = tpu.matmul %15, %3, %cst_8 {dimension_numbers = #tpu.dot_dimension_numbers<[1], [0], [0], [1], [0, 0, 1, 1], [], []>} : vector<8x64xf32>, vector<64x128xf32>, vector<8x128xf32> -> vector<8x128xf32>
    %17 = vector.broadcast %7 : vector<1x128xf32> to vector<8x128xf32>
    %18 = arith.addf %16, %17 : vector<8x128xf32>
    %cst_9 = arith.constant 0.000000e+00 : f32
    %19 = vector.broadcast %cst_9 : f32 to vector<8x128xf32>
    %20 = arith.maximumf %18, %19 : vector<8x128xf32>
    %21 = vector.extract_strided_slice %20 {offsets = [0, 0], sizes = [8, 32], strides = [1, 1]} : vector<8x128xf32> to vector<8x32xf32>
    %cst_10 = arith.constant dense<0.000000e+00> : vector<8x128xf32>
    %22 = tpu.matmul %21, %4, %cst_10 {dimension_numbers = #tpu.dot_dimension_numbers<[1], [0], [0], [1], [0, 0, 1, 1], [], []>} : vector<8x32xf32>, vector<32x128xf32>, vector<8x128xf32> -> vector<8x128xf32>
    %23 = vector.broadcast %8 : vector<1x128xf32> to vector<8x128xf32>
    %24 = arith.addf %22, %23 : vector<8x128xf32>
    %cst_11 = arith.constant 0.000000e+00 : f32
    %25 = vector.broadcast %cst_11 : f32 to vector<8x128xf32>
    %26 = arith.maximumf %24, %25 : vector<8x128xf32>
    %27 = vector.extract_strided_slice %26 {offsets = [0, 0], sizes = [8, 32], strides = [1, 1]} : vector<8x128xf32> to vector<8x32xf32>
    %cst_12 = arith.constant dense<0.000000e+00> : vector<8x128xf32>
    %28 = tpu.matmul %27, %5, %cst_12 {dimension_numbers = #tpu.dot_dimension_numbers<[1], [0], [0], [1], [0, 0, 1, 1], [], []>} : vector<8x32xf32>, vector<32x128xf32>, vector<8x128xf32> -> vector<8x128xf32>
    %29 = vector.broadcast %9 : vector<1x128xf32> to vector<8x128xf32>
    %30 = arith.addf %28, %29 : vector<8x128xf32>
    %c0_13 = arith.constant 0 : index
    %c0_14 = arith.constant 0 : index
    %31 = vector.load %arg3[%c0_13, %c0_14] : memref<8x128xf32, #tpu.memory_space<vmem>>, vector<8x128xf32>
    tpu.vector_store %arg3[%c0_13, %c0_14], %30 {strides = array<i32>} : memref<8x128xf32, #tpu.memory_space<vmem>>, vector<8x128xf32>,
    return
  }
  func.func @transform_0(%arg0: i32) -> (i32, i32) {
    %c0_i32 = arith.constant 0 : i32
    %c0_i32_0 = arith.constant 0 : i32
    return %arg0, %c0_i32 : i32, i32
  }
  func.func @transform_1(%arg0: i32) -> (i32, i32) {
    %c0_i32 = arith.constant 0 : i32
    %c0_i32_0 = arith.constant 0 : i32
    %c0_i32_1 = arith.constant 0 : i32
    return %c0_i32, %c0_i32_0 : i32, i32
  }
  func.func @transform_2(%arg0: i32) -> (i32, i32) {
    %c0_i32 = arith.constant 0 : i32
    %c0_i32_0 = arith.constant 0 : i32
    return %arg0, %c0_i32 : i32, i32
  }
}

</mosaic_0001>

<llo_original>
// kernel: tpu_custom_call.1
$region0: #{tpu_custom_call.1}
  #allocation0 [shape = 'u32[]', space=smem, size = 0x4, offset = 0x4, fixed_abs, tag = 'smem constant byte address 0x4 - core index']
  #allocation1 [shape = 'u32[144,128]{1,0:T(1,128)}', space=vmem, size = 0x12000, scoped, tag = 'internal scratch']
  %s0 = inlined_call_operand.hbm [shape: f32[8,24], index: 0, kind: input, shape index: {}]
  %s1 = inlined_call_operand.hbm [shape: f32[160,128], index: 1, kind: input, shape index: {}]
  %s2 = inlined_call_operand.hbm [shape: f32[8,128], index: 2, kind: output, shape index: {}]
  %s3 = sld [smem:[#allocation0]]
  $region26: #{tpu_custom_call.1} parent=0
    _
  %s5 = ssub.s32 1, %s3
  %s6 = scalar_select 0, %s5, %s3
  $region1: #{tpu_custom_call.1} parent=0
    #allocation2 [shape = 'u8[4096]{0}', space=vmem, size = 0x1000, scoped, tag = 'input window, operand 0, single buffered']
    #allocation3 [shape = 's32[1]{0}', space=sflag, size = 0x4, scoped, tag = 'scoped memory for tpu_custom_call.1']
    #allocation4 [shape = 's32[1]{0}', space=sflag, size = 0x4, scoped, tag = 'scoped memory for tpu_custom_call.1']
    #allocation5 [shape = 'u8[81920]{0}', space=vmem, size = 0x14000, scoped, tag = 'input window, operand 1, single buffered']
    #allocation6 [shape = 's32[1]{0}', space=sflag, size = 0x4, scoped, tag = 'scoped memory for tpu_custom_call.1']
    #allocation7 [shape = 'u8[4096]{0}', space=vmem, size = 0x1000, scoped, tag = 'output window, operand 0, single buffered']
    %7 = vsyncpa [#allocation3], 0
    %8 = vsyncpa [#allocation6], 0
    %9 = vsyncpa [#allocation4], 0
    // Predicated region
    $region2: #{tpu_custom_call.1} parent=1 // pred_check
      _
    $region3: #{tpu_custom_call.1} parent=1 // pred_check_branch
      %11 = sbr.rel (0) target = $region5
    $region4: #{tpu_custom_call.1} parent=1 // pred_region
      %s13 = ssub.s32 128, 128
      %14 = vsyncadd [#allocation3], %s13
      %s16 = sshll.u32 [#allocation2], 4
      %s17 = int_to_ptr.vmem [resolvable:$true] %s16
      %19 = dma.hbm_to_vmem [thread:$0]  %s0, 128, %s17, [#allocation3]
    $region5: #{tpu_custom_call.1} parent=1 // pred_fallthru
      _
    // Predicated region
    $region6: #{tpu_custom_call.1} parent=1 // pred_check
      _
    $region7: #{tpu_custom_call.1} parent=1 // pred_check_branch
      %21 = sbr.rel (0) target = $region9
    $region8: #{tpu_custom_call.1} parent=1 // pred_region
      %s23 = ssub.s32 2560, 2560
      %24 = vsyncadd [#allocation6], %s23
      %s25 = sshll.u32 [#allocation5], 4
      %s26 = int_to_ptr.vmem [resolvable:$true] %s25
      %31 = dma.hbm_to_vmem [thread:$0]  %s1, 2560, %s26, [#allocation6], 128, 128, 8
    $region9: #{tpu_custom_call.1} parent=1 // pred_fallthru
      _
    // Predicated region
    $region10: #{tpu_custom_call.1} parent=1 // pred_check
      _
    $region11: #{tpu_custom_call.1} parent=1 // pred_check_branch
      %33 = sbr.rel (0) target = $region13
    $region12: #{tpu_custom_call.1} parent=1 // pred_region
      %34 = dma.done [#allocation3], 128
    $region13: #{tpu_custom_call.1} parent=1 // pred_fallthru
      _
    // Predicated region
    $region14: #{tpu_custom_call.1} parent=1 // pred_check
      _
    $region15: #{tpu_custom_call.1} parent=1 // pred_check_branch
      %36 = sbr.rel (0) target = $region17
    $region16: #{tpu_custom_call.1} parent=1 // pred_region
      %37 = dma.done [#allocation6], 2560
    $region17: #{tpu_custom_call.1} parent=1 // pred_fallthru
      _
    %v38 = vld [vmem:[#allocation2] sm:$0xff]
    %v39 = vld [vmem:[#allocation5] sm:$0xff]
    %v40 = vld [vmem:[#allocation5 + $0x8] sm:$0xff]
    %v41 = vld [vmem:[#allocation5 + $0x10] sm:$0xff]
    %v42 = vld [vmem:[#allocation5 + $0x18] sm:$0xff]
    %v43 = vld [vmem:[#allocation5 + $0x20] sm:$0xff]
    %v44 = vld [vmem:[#allocation5 + $0x28] sm:$0xff]
    %v45 = vld [vmem:[#allocation5 + $0x30] sm:$0xff]
    %v46 = vld [vmem:[#allocation5 + $0x38] sm:$0xff]
    %v47 = vld [vmem:[#allocation5 + $0x40] sm:$0xff]
    %v48 = vld [vmem:[#allocation5 + $0x48] sm:$0xff]
    %v49 = vld [vmem:[#allocation5 + $0x50] sm:$0xff]
    %v50 = vld [vmem:[#allocation5 + $0x58] sm:$0xff]
    %v51 = vld [vmem:[#allocation5 + $0x60] sm:$0xff]
    %v52 = vld [vmem:[#allocation5 + $0x68] sm:$0xff]
    %v53 = vld [vmem:[#allocation5 + $0x70] sm:$0xff]
    %v54 = vld [vmem:[#allocation5 + $0x78] sm:$0xff]
    %v55 = vld [vmem:[#allocation5 + $0x80] sm:$0xff]
    %v56 = vld [vmem:[#allocation5 + $0x88] sm:$0xff]
    %v57 = vld [vmem:[#allocation5 + $0x90] sm:$0xff]
    %v58 = vld [vmem:[#allocation5 + $0x98] sm:$0xff]
    %v59 = vlaneseq
    %v60 = vshrl.u32 %v59, 7
    %v61 = vsub.s32 0, %v60
    %v62 = vrot.slane %v42, %v61
    %vm63 = vcmask 195584
    %v65 = vsel %vm63, %v38, 0
    %67 = vmatprep.subr.mxu0 0.0
    %68 = vmatpush1.msra.mxu0 0.0
    %69 = vmatprep.subr.mxu0 0.0
    %70 = vmatpush1.msra.mxu0 0.0
    %71 = vmatprep.subr.mxu0 0.0
    %72 = vmatpush1.msra.mxu0 0.0
    %73 = vmatprep.subr.mxu0 0.0
    %74 = vmatpush1.msra.mxu0 0.0
    %75 = vmatprep.subr.mxu0 0.0
    %76 = vmatpush1.msra.mxu0 0.0
    %77 = vmatprep.subr.mxu0 0.0
    %78 = vmatpush1.msra.mxu0 0.0
    %79 = vmatprep.subr.mxu0 0.0
    %80 = vmatpush1.msra.mxu0 0.0
    %81 = vmatprep.subr.mxu0 0.0
    %82 = vmatpush1.msra.mxu0 0.0
    %83 = vmatprep.subr.mxu0 0.0
    %84 = vmatpush1.msra.mxu0 0.0
    %85 = vmatprep.subr.mxu0 0.0
    %86 = vmatpush1.msra.mxu0 0.0
    %87 = vmatprep.subr.mxu0 0.0
    %88 = vmatpush1.msra.mxu0 0.0
    %89 = vmatprep.subr.mxu0 0.0
    %90 = vmatpush1.msra.mxu0 0.0
    %91 = vmatprep.subr.mxu0 0.0
    %92 = vmatpush1.msra.mxu0 0.0
    %93 = vmatprep.subr.mxu0 0.0
    %94 = vmatpush1.msra.mxu0 %v41
    %95 = vmatprep.subr.mxu0 0.0
    %96 = vmatpush1.msra.mxu0 %v40
    %97 = vmatprep.subr.mxu0 0.0
    %98 = vmatpush1.msra.mxu0 %v39
    %99 = vmatprep.subr.mxu0 0.0
    %100 = vmatpush2.msra.mxu0 0.0
    %101 = vmatprep.subr.mxu0 0.0
    %102 = vmatpush2.msra.mxu0 0.0
    %103 = vmatprep.subr.mxu0 0.0
    %104 = vmatpush2.msra.mxu0 0.0
    %105 = vmatprep.subr.mxu0 0.0
    %106 = vmatpush2.msra.mxu0 0.0
    %107 = vmatprep.subr.mxu0 0.0
    %108 = vmatpush2.msra.mxu0 0.0
    %109 = vmatprep.subr.mxu0 0.0
    %110 = vmatpush2.msra.mxu0 0.0
    %111 = vmatprep.subr.mxu0 0.0
    %112 = vmatpush2.msra.mxu0 0.0
    %113 = vmatprep.subr.mxu0 0.0
    %114 = vmatpush2.msra.mxu0 0.0
    %115 = vmatprep.subr.mxu0 0.0
    %116 = vmatpush2.msra.mxu0 0.0
    %117 = vmatprep.subr.mxu0 0.0
    %118 = vmatpush2.msra.mxu0 0.0
    %119 = vmatprep.subr.mxu0 0.0
    %120 = vmatpush2.msra.mxu0 0.0
    %121 = vmatprep.subr.mxu0 0.0
    %122 = vmatpush2.msra.mxu0 0.0
    %123 = vmatprep.subr.mxu0 0.0
    %124 = vmatpush2.msra.mxu0 0.0
    %125 = vmatprep.subr.mxu0 0.0
    %126 = vmatpush2.msra.mxu0 0.0
    %127 = vmatprep.subr.mxu0 0.0
    %128 = vmatpush2.msra.mxu0 0.0
    %129 = vmatprep.subr.mxu0 0.0
    %130 = vmatpush2.msra.mxu0 0.0
    %131 = vmatprep.mubr.f32.mxu0 0.0
    %132 = vmatmul.mubr.f32.gmra.mxu0 %v65
    %v133 = vpop.f32.mrf.mxu0
    %v134 = vadd.f32 %v62, %v133
    %v135 = vpop.f32.mrf.mxu0
    %136 = vdwg.mxu0
    %v137 = vmax.f32 %v134, 0.0
    %v138 = vlaneseq
    %v139 = vshrl.u32 %v138, 7
    %v140 = vsub.s32 1, %v139
    %v141 = vrot.slane %v42, %v140
    %vm142 = vcmask 523264
    %v144 = vsel %vm142, %v137, 0
    %146 = vmatprep.subr.mxu0 0.0
    %147 = vmatpush1.msra.mxu0 0.0
    %148 = vmatprep.subr.mxu0 0.0
    %149 = vmatpush1.msra.mxu0 0.0
    %150 = vmatprep.subr.mxu0 0.0
    %151 = vmatpush1.msra.mxu0 0.0
    %152 = vmatprep.subr.mxu0 0.0
    %153 = vmatpush1.msra.mxu0 0.0
    %154 = vmatprep.subr.mxu0 0.0
    %155 = vmatpush1.msra.mxu0 0.0
    %156 = vmatprep.subr.mxu0 0.0
    %157 = vmatpush1.msra.mxu0 0.0
    %158 = vmatprep.subr.mxu0 0.0
    %159 = vmatpush1.msra.mxu0 0.0
    %160 = vmatprep.subr.mxu0 0.0
    %161 = vmatpush1.msra.mxu0 0.0
    %162 = vmatprep.subr.mxu0 0.0
    %163 = vmatpush1.msra.mxu0 %v50
    %164 = vmatprep.subr.mxu0 0.0
    %165 = vmatpush1.msra.mxu0 %v49
    %166 = vmatprep.subr.mxu0 0.0
    %167 = vmatpush1.msra.mxu0 %v48
    %168 = vmatprep.subr.mxu0 0.0
    %169 = vmatpush1.msra.mxu0 %v47
    %170 = vmatprep.subr.mxu0 0.0
    %171 = vmatpush1.msra.mxu0 %v46
    %172 = vmatprep.subr.mxu0 0.0
    %173 = vmatpush1.msra.mxu0 %v45
    %174 = vmatprep.subr.mxu0 0.0
    %175 = vmatpush1.msra.mxu0 %v44
    %176 = vmatprep.subr.mxu0 0.0
    %177 = vmatpush1.msra.mxu0 %v43
    %178 = vmatprep.subr.mxu0 0.0
    %179 = vmatpush2.msra.mxu0 0.0
    %180 = vmatprep.subr.mxu0 0.0
    %181 = vmatpush2.msra.mxu0 0.0
    %182 = vmatprep.subr.mxu0 0.0
    %183 = vmatpush2.msra.mxu0 0.0
    %184 = vmatprep.subr.mxu0 0.0
    %185 = vmatpush2.msra.mxu0 0.0
    %186 = vmatprep.subr.mxu0 0.0
    %187 = vmatpush2.msra.mxu0 0.0
    %188 = vmatprep.subr.mxu0 0.0
    %189 = vmatpush2.msra.mxu0 0.0
    %190 = vmatprep.subr.mxu0 0.0
    %191 = vmatpush2.msra.mxu0 0.0
    %192 = vmatprep.subr.mxu0 0.0
    %193 = vmatpush2.msra.mxu0 0.0
    %194 = vmatprep.subr.mxu0 0.0
    %195 = vmatpush2.msra.mxu0 0.0
    %196 = vmatprep.subr.mxu0 0.0
    %197 = vmatpush2.msra.mxu0 0.0
    %198 = vmatprep.subr.mxu0 0.0
    %199 = vmatpush2.msra.mxu0 0.0
    %200 = vmatprep.subr.mxu0 0.0
    %201 = vmatpush2.msra.mxu0 0.0
    %202 = vmatprep.subr.mxu0 0.0
    %203 = vmatpush2.msra.mxu0 0.0
    %204 = vmatprep.subr.mxu0 0.0
    %205 = vmatpush2.msra.mxu0 0.0
    %206 = vmatprep.subr.mxu0 0.0
    %207 = vmatpush2.msra.mxu0 0.0
    %208 = vmatprep.subr.mxu0 0.0
    %209 = vmatpush2.msra.mxu0 0.0
    %210 = vmatprep.mubr.f32.mxu0 0.0
    %211 = vmatmul.mubr.f32.gmra.mxu0 %v144
    %v212 = vpop.f32.mrf.mxu0
    %v213 = vadd.f32 %v141, %v212
    %v214 = vpop.f32.mrf.mxu0
    %215 = vdwg.mxu0
    %v216 = vmax.f32 %v213, 0.0
    %v217 = vlaneseq
    %v218 = vshrl.u32 %v217, 7
    %v219 = vsub.s32 2, %v218
    %v220 = vrot.slane %v42, %v219
    %vm221 = vcmask 261120
    %v223 = vsel %vm221, %v216, 0
    %225 = vmatprep.subr.mxu0 0.0
    %226 = vmatpush1.msra.mxu0 0.0
    %227 = vmatprep.subr.mxu0 0.0
    %228 = vmatpush1.msra.mxu0 0.0
    %229 = vmatprep.subr.mxu0 0.0
    %230 = vmatpush1.msra.mxu0 0.0
    %231 = vmatprep.subr.mxu0 0.0
    %232 = vmatpush1.msra.mxu0 0.0
    %233 = vmatprep.subr.mxu0 0.0
    %234 = vmatpush1.msra.mxu0 0.0
    %235 = vmatprep.subr.mxu0 0.0
    %236 = vmatpush1.msra.mxu0 0.0
    %237 = vmatprep.subr.mxu0 0.0
    %238 = vmatpush1.msra.mxu0 0.0
    %239 = vmatprep.subr.mxu0 0.0
    %240 = vmatpush1.msra.mxu0 0.0
    %241 = vmatprep.subr.mxu0 0.0
    %242 = vmatpush1.msra.mxu0 0.0
    %243 = vmatprep.subr.mxu0 0.0
    %244 = vmatpush1.msra.mxu0 0.0
    %245 = vmatprep.subr.mxu0 0.0
    %246 = vmatpush1.msra.mxu0 0.0
    %247 = vmatprep.subr.mxu0 0.0
    %248 = vmatpush1.msra.mxu0 0.0
    %249 = vmatprep.subr.mxu0 0.0
    %250 = vmatpush1.msra.mxu0 %v54
    %251 = vmatprep.subr.mxu0 0.0
    %252 = vmatpush1.msra.mxu0 %v53
    %253 = vmatprep.subr.mxu0 0.0
    %254 = vmatpush1.msra.mxu0 %v52
    %255 = vmatprep.subr.mxu0 0.0
    %256 = vmatpush1.msra.mxu0 %v51
    %257 = vmatprep.subr.mxu0 0.0
    %258 = vmatpush2.msra.mxu0 0.0
    %259 = vmatprep.subr.mxu0 0.0
    %260 = vmatpush2.msra.mxu0 0.0
    %261 = vmatprep.subr.mxu0 0.0
    %262 = vmatpush2.msra.mxu0 0.0
    %263 = vmatprep.subr.mxu0 0.0
    %264 = vmatpush2.msra.mxu0 0.0
    %265 = vmatprep.subr.mxu0 0.0
    %266 = vmatpush2.msra.mxu0 0.0
    %267 = vmatprep.subr.mxu0 0.0
    %268 = vmatpush2.msra.mxu0 0.0
    %269 = vmatprep.subr.mxu0 0.0
    %270 = vmatpush2.msra.mxu0 0.0
    %271 = vmatprep.subr.mxu0 0.0
    %272 = vmatpush2.msra.mxu0 0.0
    %273 = vmatprep.subr.mxu0 0.0
    %274 = vmatpush2.msra.mxu0 0.0
    %275 = vmatprep.subr.mxu0 0.0
    %276 = vmatpush2.msra.mxu0 0.0
    %277 = vmatprep.subr.mxu0 0.0
    %278 = vmatpush2.msra.mxu0 0.0
    %279 = vmatprep.subr.mxu0 0.0
    %280 = vmatpush2.msra.mxu0 0.0
    %281 = vmatprep.subr.mxu0 0.0
    %282 = vmatpush2.msra.mxu0 0.0
    %283 = vmatprep.subr.mxu0 0.0
    %284 = vmatpush2.msra.mxu0 0.0
    %285 = vmatprep.subr.mxu0 0.0
    %286 = vmatpush2.msra.mxu0 0.0
    %287 = vmatprep.subr.mxu0 0.0
    %288 = vmatpush2.msra.mxu0 0.0
    %289 = vmatprep.mubr.f32.mxu0 0.0
    %290 = vmatmul.mubr.f32.gmra.mxu0 %v223
    %v291 = vpop.f32.mrf.mxu0
    %v292 = vadd.f32 %v220, %v291
    %v293 = vpop.f32.mrf.mxu0
    %294 = vdwg.mxu0
    %v295 = vmax.f32 %v292, 0.0
    %v296 = vlaneseq
    %v297 = vshrl.u32 %v296, 7
    %v298 = vsub.s32 3, %v297
    %v299 = vrot.slane %v42, %v298
    %v301 = vsel %vm221, %v295, 0
    %303 = vmatprep.subr.mxu0 0.0
    %304 = vmatpush1.msra.mxu0 0.0
    %305 = vmatprep.subr.mxu0 0.0
    %306 = vmatpush1.msra.mxu0 0.0
    %307 = vmatprep.subr.mxu0 0.0
    %308 = vmatpush1.msra.mxu0 0.0
    %309 = vmatprep.subr.mxu0 0.0
    %310 = vmatpush1.msra.mxu0 0.0
    %311 = vmatprep.subr.mxu0 0.0
    %312 = vmatpush1.msra.mxu0 0.0
    %313 = vmatprep.subr.mxu0 0.0
    %314 = vmatpush1.msra.mxu0 0.0
    %315 = vmatprep.subr.mxu0 0.0
    %316 = vmatpush1.msra.mxu0 0.0
    %317 = vmatprep.subr.mxu0 0.0
    %318 = vmatpush1.msra.mxu0 0.0
    %319 = vmatprep.subr.mxu0 0.0
    %320 = vmatpush1.msra.mxu0 0.0
    %321 = vmatprep.subr.mxu0 0.0
    %322 = vmatpush1.msra.mxu0 0.0
    %323 = vmatprep.subr.mxu0 0.0
    %324 = vmatpush1.msra.mxu0 0.0
    %325 = vmatprep.subr.mxu0 0.0
    %326 = vmatpush1.msra.mxu0 0.0
    %327 = vmatprep.subr.mxu0 0.0
    %328 = vmatpush1.msra.mxu0 %v58
    %329 = vmatprep.subr.mxu0 0.0
    %330 = vmatpush1.msra.mxu0 %v57
    %331 = vmatprep.subr.mxu0 0.0
    %332 = vmatpush1.msra.mxu0 %v56
    %333 = vmatprep.subr.mxu0 0.0
    %334 = vmatpush1.msra.mxu0 %v55
    %335 = vmatprep.subr.mxu0 0.0
    %336 = vmatpush2.msra.mxu0 0.0
    %337 = vmatprep.subr.mxu0 0.0
    %338 = vmatpush2.msra.mxu0 0.0
    %339 = vmatprep.subr.mxu0 0.0
    %340 = vmatpush2.msra.mxu0 0.0
    %341 = vmatprep.subr.mxu0 0.0
    %342 = vmatpush2.msra.mxu0 0.0
    %343 = vmatprep.subr.mxu0 0.0
    %344 = vmatpush2.msra.mxu0 0.0
    %345 = vmatprep.subr.mxu0 0.0
    %346 = vmatpush2.msra.mxu0 0.0
    %347 = vmatprep.subr.mxu0 0.0
    %348 = vmatpush2.msra.mxu0 0.0
    %349 = vmatprep.subr.mxu0 0.0
    %350 = vmatpush2.msra.mxu0 0.0
    %351 = vmatprep.subr.mxu0 0.0
    %352 = vmatpush2.msra.mxu0 0.0
    %353 = vmatprep.subr.mxu0 0.0
    %354 = vmatpush2.msra.mxu0 0.0
    %355 = vmatprep.subr.mxu0 0.0
    %356 = vmatpush2.msra.mxu0 0.0
    %357 = vmatprep.subr.mxu0 0.0
    %358 = vmatpush2.msra.mxu0 0.0
    %359 = vmatprep.subr.mxu0 0.0
    %360 = vmatpush2.msra.mxu0 0.0
    %361 = vmatprep.subr.mxu0 0.0
    %362 = vmatpush2.msra.mxu0 0.0
    %363 = vmatprep.subr.mxu0 0.0
    %364 = vmatpush2.msra.mxu0 0.0
    %365 = vmatprep.subr.mxu0 0.0
    %366 = vmatpush2.msra.mxu0 0.0
    %367 = vmatprep.mubr.f32.mxu0 0.0
    %368 = vmatmul.mubr.f32.gmra.mxu0 %v301
    %v369 = vpop.f32.mrf.mxu0
    %v370 = vadd.f32 %v299, %v369
    %v371 = vpop.f32.mrf.mxu0
    %372 = vdwg.mxu0
    %373 = vst [vmem:[#allocation7] sm:$0xff] %v370
    // Predicated region
    $region18: #{tpu_custom_call.1} parent=1 // pred_check
      _
    $region19: #{tpu_custom_call.1} parent=1 // pred_check_branch
      %375 = sbr.rel (0) target = $region21
    $region20: #{tpu_custom_call.1} parent=1 // pred_region
      %s377 = ssub.s32 128, 128
      %378 = vsyncadd [#allocation4], %s377
      %s380 = sshll.u32 [#allocation7], 4
      %s381 = int_to_ptr.vmem [resolvable:$true] %s380
      %383 = dma.vmem_to_hbm [thread:$0]  %s381, 128, %s2, [#allocation4]
    $region21: #{tpu_custom_call.1} parent=1 // pred_fallthru
      _
    // Predicated region
    $region22: #{tpu_custom_call.1} parent=1 // pred_check
      _
    $region23: #{tpu_custom_call.1} parent=1 // pred_check_branch
      %385 = sbr.rel (0) target = $region25
    $region24: #{tpu_custom_call.1} parent=1 // pred_region
      %386 = dma.done [#allocation4], 128
    $region25: #{tpu_custom_call.1} parent=1 // pred_fallthru
      _
    %387 = vsyncpa [#allocation3], 1
    %388 = vsyncpa [#allocation6], 1
    %389 = vsyncpa [#allocation4], 1

</llo_original>
